<compile_context>
chip_gen: v5e
topology: v5e:2x2
jax: 0.10.0
libtpu: 0.0.40
codegen_flags: <defaults>
</compile_context>

<pallas_src>
import jax
import jax.numpy as jnp
from jax.experimental import pallas as pl
from jax.experimental.pallas import tpu as pltpu

RATIO = 0.2            # module's self.ratio (the divisor, as written in forward())
KEEP_P = 1.0 - 0.2     # binomial keep probability used in forward()
MASK_LEN = 10          # hard-coded mask length in forward()
LANE_WIDTH = 640       # lcm(10, 128): 5 full 128-lane rows, mask pattern repeats cleanly
TILE_M = 512           # rows per block: 512*640*4B = 1.25 MiB per f32 buffer


def _dropout_kernel(mask_ref, x_ref, o_ref):
    # mask_ref: (1, 640) f32, already scaled by 1/RATIO; broadcasts over the row tile.
    # x_ref:    (block_m, 640) in the input's native dtype.
    o_ref[...] = x_ref[...].astype(jnp.float32) * mask_ref[...]


def dropout_forward(x, seed=0):
    """x: array with last dim == 10 (any leading dims, any float dtype)."""
    assert x.shape[-1] == MASK_LEN, "forward() hard-codes a length-10 mask"
    orig_shape = x.shape

    # One Bernoulli(keep=0.8) mask of length 10, scale 1/RATIO folded in,
    # tiled to a full lane-dense (1, 640) row.
    # TODO(synk): jax.random draw is distributionally equivalent to the reference's
    # numpy binomial but not bit-identical for a given seed.
    key = jax.random.PRNGKey(seed)
    mask10 = jax.random.bernoulli(key, KEEP_P, (MASK_LEN,)).astype(jnp.float32)
    mask_row = jnp.tile(mask10 * (1.0 / RATIO),
                        LANE_WIDTH // MASK_LEN).reshape(1, LANE_WIDTH)

    # Flatten and pad to a whole number of (block_m, 640) tiles.
    flat = x.reshape(-1)
    n_elem = flat.shape[0]
    m0 = pl.cdiv(n_elem, LANE_WIDTH)                       # rows needed
    block_m = min(TILE_M, ((m0 + 7) // 8) * 8)             # multiple of 8, <= TILE_M
    m = ((m0 + block_m - 1) // block_m) * block_m          # rows after padding
    pad = m * LANE_WIDTH - n_elem
    x2d = jnp.pad(flat, (0, pad)).reshape(m, LANE_WIDTH)   # native dtype, no wrapper cast

    grid_m = m // block_m
    out = pl.pallas_call(
        _dropout_kernel,
        out_shape=jax.ShapeDtypeStruct((m, LANE_WIDTH), jnp.float32),
        grid=(grid_m,),
        in_specs=[
            pl.BlockSpec((1, LANE_WIDTH), lambda i: (0, 0)),        # same mask each step
            pl.BlockSpec((block_m, LANE_WIDTH), lambda i: (i, 0)),
        ],
        out_specs=pl.BlockSpec((block_m, LANE_WIDTH), lambda i: (i, 0)),
        compiler_params=pltpu.CompilerParams(
            dimension_semantics=("parallel",)),
    )(mask_row, x2d)

    return out.reshape(-1)[:n_elem].reshape(orig_shape)


if __name__ == "__main__":
    key = jax.random.PRNGKey(0)
    # Small shape consistent with the module: last dim must be 10.
    x = jax.random.normal(key, (2, 8, 10), dtype=jnp.float32)

    y = dropout_forward(x, seed=0)
    jax.block_until_ready(y)

    # Sanity: every output element is either 0 or x / 0.2 elementwise.
    scaled = x / RATIO
    ok = bool(jnp.all(jnp.isclose(y, 0.0) | jnp.isclose(y, scaled)))
    assert ok, "output not consistent with mask-then-scale semantics"
    assert y.shape == x.shape and y.dtype == jnp.float32

    print("KERNEL_OK")
</pallas_src>

<mosaic_0001>
module attributes {stable_mosaic.version = 11 : i64} {
  func.func @_dropout_kernel(%arg0: i32, %arg1: memref<1x640xf32, #tpu.memory_space<vmem>>, %arg2: memref<8x640xf32, #tpu.memory_space<vmem>>, %arg3: memref<8x640xf32, #tpu.memory_space<vmem>>) attributes {dimension_semantics = [#tpu.dimension_semantics<parallel>], iteration_bounds = array<i64: 1>, scalar_prefetch = 0 : i64, scratch_operands = 0 : i64, tpu.core_type = #tpu.core_type<tc>, window_params = [{pipeline_mode = #tpu.pipeline_mode<synchronous>, transform_indices = @transform_0, window_bounds = array<i64: 1, 640>}, {transform_indices = @transform_1, window_bounds = array<i64: 8, 640>}, {transform_indices = @transform_2, window_bounds = array<i64: 8, 640>}]} {
    %c0 = arith.constant 0 : index
    %c0_0 = arith.constant 0 : index
    %0 = vector.load %arg2[%c0, %c0_0] : memref<8x640xf32, #tpu.memory_space<vmem>>, vector<8x640xf32>
    %c0_1 = arith.constant 0 : index
    %c0_2 = arith.constant 0 : index
    %1 = vector.load %arg1[%c0_1, %c0_2] : memref<1x640xf32, #tpu.memory_space<vmem>>, vector<1x640xf32>
    %2 = vector.broadcast %1 : vector<1x640xf32> to vector<8x640xf32>
    %3 = arith.mulf %0, %2 : vector<8x640xf32>
    %c0_3 = arith.constant 0 : index
    %c0_4 = arith.constant 0 : index
    %4 = vector.load %arg3[%c0_3, %c0_4] : memref<8x640xf32, #tpu.memory_space<vmem>>, vector<8x640xf32>
    tpu.vector_store %arg3[%c0_3, %c0_4], %3 {strides = array<i32>} : memref<8x640xf32, #tpu.memory_space<vmem>>, vector<8x640xf32>,
    return
  }
  func.func @transform_0(%arg0: i32) -> (i32, i32) {
    %c0_i32 = arith.constant 0 : i32
    %c0_i32_0 = arith.constant 0 : i32
    %c0_i32_1 = arith.constant 0 : i32
    return %c0_i32, %c0_i32_0 : i32, i32
  }
  func.func @transform_1(%arg0: i32) -> (i32, i32) {
    %c0_i32 = arith.constant 0 : i32
    %c0_i32_0 = arith.constant 0 : i32
    return %arg0, %c0_i32 : i32, i32
  }
  func.func @transform_2(%arg0: i32) -> (i32, i32) {
    %c0_i32 = arith.constant 0 : i32
    %c0_i32_0 = arith.constant 0 : i32
    return %arg0, %c0_i32 : i32, i32
  }
}

</mosaic_0001>

<llo_original>
// kernel: tpu_custom_call.1
$region0: #{tpu_custom_call.1}
  #allocation0 [shape = 'u32[]', space=smem, size = 0x4, offset = 0x4, fixed_abs, tag = 'smem constant byte address 0x4 - core index']
  #allocation1 [shape = 'u32[72,128]{1,0:T(1,128)}', space=vmem, size = 0x9000, scoped, tag = 'internal scratch']
  %s0 = inlined_call_operand.hbm [shape: f32[1,640], index: 0, kind: input, shape index: {}]
  %s1 = inlined_call_operand.hbm [shape: f32[8,640], index: 1, kind: input, shape index: {}]
  %s2 = inlined_call_operand.hbm [shape: f32[8,640], index: 2, kind: output, shape index: {}]
  %s3 = sld [smem:[#allocation0]]
  $region26: #{tpu_custom_call.1} parent=0
    _
  %s5 = ssub.s32 1, %s3
  %s6 = scalar_select 0, %s5, %s3
  $region1: #{tpu_custom_call.1} parent=0
    #allocation2 [shape = 'u8[2560]{0}', space=vmem, size = 0xc00, scoped, tag = 'input window, operand 0, single buffered']
    #allocation3 [shape = 's32[1]{0}', space=sflag, size = 0x4, scoped, tag = 'scoped memory for tpu_custom_call.1']
    #allocation4 [shape = 's32[1]{0}', space=sflag, size = 0x4, scoped, tag = 'scoped memory for tpu_custom_call.1']
    #allocation5 [shape = 'u8[20480]{0}', space=vmem, size = 0x5000, scoped, tag = 'input window, operand 1, single buffered']
    #allocation6 [shape = 's32[1]{0}', space=sflag, size = 0x4, scoped, tag = 'scoped memory for tpu_custom_call.1']
    #allocation7 [shape = 'u8[20480]{0}', space=vmem, size = 0x5000, scoped, tag = 'output window, operand 0, single buffered']
    %7 = vsyncpa [#allocation3], 0
    %8 = vsyncpa [#allocation6], 0
    %9 = vsyncpa [#allocation4], 0
    // Predicated region
    $region2: #{tpu_custom_call.1} parent=1 // pred_check
      _
    $region3: #{tpu_custom_call.1} parent=1 // pred_check_branch
      %11 = sbr.rel (0) target = $region5
    $region4: #{tpu_custom_call.1} parent=1 // pred_region
      %13 = vsyncadd [#allocation3], 0
      %s15 = sshll.u32 %s0, 4
      %s16 = int_to_ptr.hbm [resolvable:$true] %s15
      %s17 = sshll.u32 [#allocation2], 4
      %s18 = int_to_ptr.vmem [resolvable:$true] %s17
      %20 = dma.hbm_to_vmem [thread:$0]  %s16, 80, %s18, [#allocation3]
    $region5: #{tpu_custom_call.1} parent=1 // pred_fallthru
      _
    // Predicated region
    $region6: #{tpu_custom_call.1} parent=1 // pred_check
      _
    $region7: #{tpu_custom_call.1} parent=1 // pred_check_branch
      %22 = sbr.rel (0) target = $region9
    $region8: #{tpu_custom_call.1} parent=1 // pred_region
      %24 = vsyncadd [#allocation6], 0
      %s26 = sshll.u32 %s1, 4
      %s27 = int_to_ptr.hbm [resolvable:$true] %s26
      %s28 = sshll.u32 [#allocation5], 4
      %s29 = int_to_ptr.vmem [resolvable:$true] %s28
      %31 = dma.hbm_to_vmem [thread:$0]  %s27, 640, %s29, [#allocation6]
    $region9: #{tpu_custom_call.1} parent=1 // pred_fallthru
      _
    // Predicated region
    $region10: #{tpu_custom_call.1} parent=1 // pred_check
      _
    $region11: #{tpu_custom_call.1} parent=1 // pred_check_branch
      %33 = sbr.rel (0) target = $region13
    $region12: #{tpu_custom_call.1} parent=1 // pred_region
      %35 = dma.done [#allocation3], 80
    $region13: #{tpu_custom_call.1} parent=1 // pred_fallthru
      _
    // Predicated region
    $region14: #{tpu_custom_call.1} parent=1 // pred_check
      _
    $region15: #{tpu_custom_call.1} parent=1 // pred_check_branch
      %37 = sbr.rel (0) target = $region17
    $region16: #{tpu_custom_call.1} parent=1 // pred_region
      %39 = dma.done [#allocation6], 640
    $region17: #{tpu_custom_call.1} parent=1 // pred_fallthru
      _
    %v40 = vld [vmem:[#allocation5] sm:$0xff]
    %v41 = vld [vmem:[#allocation5 + $0x8] sm:$0xff]
    %v42 = vld [vmem:[#allocation5 + $0x10] sm:$0xff]
    %v43 = vld [vmem:[#allocation5 + $0x18] sm:$0xff]
    %v44 = vld [vmem:[#allocation5 + $0x20] sm:$0xff]
    %v45 = vld [vmem:[#allocation2] sm:$0x1f]
    %v47 = vperm.slane %v45, 0
    %v48 = vperm.slane %v45, 1
    %v49 = vperm.slane %v45, 2
    %v50 = vperm.slane %v45, 3
    %v51 = vperm.slane %v45, 4
    %v57 = vmul.f32 %v40, %v47
    %v58 = vmul.f32 %v41, %v48
    %v59 = vmul.f32 %v42, %v49
    %v60 = vmul.f32 %v43, %v50
    %v61 = vmul.f32 %v44, %v51
    %62 = vst [vmem:[#allocation7] sm:$0xff] %v57
    %63 = vst [vmem:[#allocation7 + $0x8] sm:$0xff] %v58
    %64 = vst [vmem:[#allocation7 + $0x10] sm:$0xff] %v59
    %65 = vst [vmem:[#allocation7 + $0x18] sm:$0xff] %v60
    %66 = vst [vmem:[#allocation7 + $0x20] sm:$0xff] %v61
    // Predicated region
    $region18: #{tpu_custom_call.1} parent=1 // pred_check
      _
    $region19: #{tpu_custom_call.1} parent=1 // pred_check_branch
      %68 = sbr.rel (0) target = $region21
    $region20: #{tpu_custom_call.1} parent=1 // pred_region
      %70 = vsyncadd [#allocation4], 0
      %s72 = sshll.u32 [#allocation7], 4
      %s73 = int_to_ptr.vmem [resolvable:$true] %s72
      %s74 = sshll.u32 %s2, 4
      %s75 = int_to_ptr.hbm [resolvable:$true] %s74
      %77 = dma.vmem_to_hbm [thread:$0]  %s73, 640, %s75, [#allocation4]
    $region21: #{tpu_custom_call.1} parent=1 // pred_fallthru
      _
    // Predicated region
    $region22: #{tpu_custom_call.1} parent=1 // pred_check
      _
    $region23: #{tpu_custom_call.1} parent=1 // pred_check_branch
      %79 = sbr.rel (0) target = $region25
    $region24: #{tpu_custom_call.1} parent=1 // pred_region
      %81 = dma.done [#allocation4], 640
    $region25: #{tpu_custom_call.1} parent=1 // pred_fallthru
      _
    %82 = vsyncpa [#allocation3], 1
    %83 = vsyncpa [#allocation6], 1
    %84 = vsyncpa [#allocation4], 1

</llo_original>
